<compile_context>
chip_gen: v7x
topology: tpu7x:2x2x1
jax: 0.10.0
libtpu: 0.0.40
codegen_flags: <defaults>
</compile_context>

<pallas_src>
import math
import jax
import jax.numpy as jnp
from jax.experimental import pallas as pl
from jax.experimental.pallas import tpu as pltpu

LANE = 128          # TPU lane width; output width padded to a multiple of this
_MIB = 1 << 20


def layer_kernel(x_ref, wt_ref, b_ref, o_ref):
    # x_ref:  (tm, in_dim)   bf16 input row tile
    # wt_ref: (in_dim, tn)   bf16 transposed weight column tile
    # b_ref:  (1, tn)        f32 bias tile
    # o_ref:  (tm, tn)       lane-dense output tile
    y = jnp.dot(x_ref[...], wt_ref[...], preferred_element_type=jnp.float32)
    y = y + b_ref[...]                       # bias broadcast over rows (f32)
    y = jnp.maximum(y, 0.0)                  # ReLU activation, fused epilogue
    o_ref[...] = y.astype(o_ref.dtype)


def _round_up(v, m):
    return (v + m - 1) // m * m


def prepare_params(w, b):
    """One-time parameter prep (do NOT call per forward).

    w: [out_dim, in_dim] (PyTorch Linear layout), b: [out_dim].
    Returns W^T (bf16) zero-padded to [in_dim, out_pad] and bias (f32)
    [1, out_pad]; out_pad is a 128 multiple for lane-dense, unmasked stores.
    Zero padding is exact under ReLU and sliced off at the last layer.
    """
    out_dim, in_dim = w.shape
    out_pad = max(LANE, _round_up(out_dim, LANE))
    wt = jnp.zeros((in_dim, out_pad), jnp.bfloat16).at[:, :out_dim].set(
        w.T.astype(jnp.bfloat16))
    b2 = jnp.zeros((1, out_pad), jnp.float32).at[0, :out_dim].set(
        b.astype(jnp.float32))
    return wt, b2


def _choose_tiles(n_rows, in_dim, out_pad, out_bytes, vmem_budget=20 * _MIB):
    """Pick (tm, tn) under a VMEM budget; even/>=2 row steps for megacore."""
    x_bytes, w_bytes = 2, 2  # bf16 streams

    # Column tile: keep full width when small; otherwise 512 (256-multiple for
    # the 256x256 MXU on v6e/v7x).  Shrink if even a 16-row tile won't fit.
    tn = out_pad if out_pad <= 512 else 512

    def need(tm, tn):
        return (2 * (tm * in_dim * x_bytes + tm * tn * out_bytes)   # x, y dbl-buf
                + 2 * (in_dim * tn * w_bytes + tn * 4))             # W^T, bias

    while tn > LANE and need(16, tn) > vmem_budget:
        tn //= 2

    # Row tile: as large as the budget allows (cap 1024; amortizes the
    # ~0.35 us/step pipeline overhead).
    cap = 1024
    while cap > 16 and need(cap, tn) > vmem_budget:
        cap //= 2

    # Aim for >= 2 row steps (both v7x TensorCores get work) and an even step
    # count when the grid is small (avoid one core doing 2x the work).
    steps = max(2, pl.cdiv(n_rows, cap))
    if steps < 8 and steps % 2 == 1:
        steps += 1
    tm = max(16, min(cap, _round_up(pl.cdiv(n_rows, steps), 16)))
    return tm, tn


def layer_forward(x, wt_pad, b_pad, out_dim, *, out_dtype=jnp.float32,
                  slice_output=True, tm=None, tn=None):
    """x: [N, in_dim] (any float dtype; cast to bf16 once), wt_pad: [in_dim, out_pad]
    bf16, b_pad: [1, out_pad] f32.  Returns [N, out_dim] (or [N, out_pad] when
    slice_output=False, for chaining layers in padded width)."""
    if x.dtype != jnp.bfloat16:
        x = x.astype(jnp.bfloat16)   # in an MLP, keep activations bf16 end-to-end
    N, in_dim = x.shape
    out_pad = wt_pad.shape[1]
    out_bytes = jnp.dtype(out_dtype).itemsize

    auto_tm, auto_tn = _choose_tiles(N, in_dim, out_pad, out_bytes)
    tm = auto_tm if tm is None else tm
    tn = auto_tn if tn is None else tn

    num_row = pl.cdiv(N, tm)          # partial last row block is masked by Pallas
    num_col = pl.cdiv(out_pad, tn)
    grid = (num_col, num_row)         # columns outer -> W^T tile resident over row sweep

    # Explicit scoped-VMEM limit (v5e default is only 16 MiB); generous 2x margin.
    vmem_need = (2 * (tm * in_dim * 2 + tm * tn * out_bytes)
                 + 2 * (in_dim * tn * 2 + tn * 4))
    vmem_limit = int(min(64 * _MIB, max(2 * vmem_need + 2 * _MIB, 8 * _MIB)))

    cost = pl.CostEstimate(
        flops=2 * N * in_dim * out_pad,
        transcendentals=0,
        bytes_accessed=(N * in_dim * 2 * num_col      # x (re-read per column block)
                        + in_dim * out_pad * 2        # W^T
                        + out_pad * 4                 # bias
                        + N * out_pad * out_bytes),   # y
    )

    out = pl.pallas_call(
        layer_kernel,
        out_shape=jax.ShapeDtypeStruct((N, out_pad), out_dtype),
        grid_spec=pltpu.PrefetchScalarGridSpec(
            num_scalar_prefetch=0,
            grid=grid,
            in_specs=[
                pl.BlockSpec((tm, in_dim), lambda j, i: (i, 0)),   # x row tile
                pl.BlockSpec((in_dim, tn), lambda j, i: (0, j)),   # W^T column tile
                pl.BlockSpec((1, tn), lambda j, i: (0, j)),        # bias tile
            ],
            out_specs=pl.BlockSpec((tm, tn), lambda j, i: (i, j)),
        ),
        compiler_params=pltpu.CompilerParams(
            dimension_semantics=("parallel", "parallel"),
            vmem_limit_bytes=vmem_limit,
        ),
        cost_estimate=cost,
    )(x, wt_pad, b_pad)

    if slice_output and out_dim != out_pad:
        # Only taken at the last layer; intermediate layers chain in padded width.
        out = out[:, :out_dim]
    return out


def init_linear_params(key, in_dim, out_dim):
    """Deterministic PyTorch-style default init: U(-1/sqrt(in_dim), 1/sqrt(in_dim))."""
    kw, kb = jax.random.split(key)
    bound = 1.0 / math.sqrt(in_dim)
    w = jax.random.uniform(kw, (out_dim, in_dim), jnp.float32, -bound, bound)
    b = jax.random.uniform(kb, (out_dim,), jnp.float32, -bound, bound)
    return w, b


if __name__ == "__main__":
    key = jax.random.PRNGKey(0)
    kx, kp = jax.random.split(key)

    # Small synthetic shapes; N deliberately NOT a tile multiple (partial block path).
    N, in_dim, out_dim = 250, 32, 64
    x = jax.random.normal(kx, (N, in_dim), jnp.float32)
    w, b = init_linear_params(kp, in_dim, out_dim)

    # One-time parameter prep (transpose + lane padding + bf16 cast), off the hot path.
    wt_pad, b_pad = prepare_params(w, b)
    x_bf16 = x.astype(jnp.bfloat16)   # in a real MLP, activations stay bf16 end-to-end

    out = layer_forward(x_bf16, wt_pad, b_pad, out_dim)
    out = jax.block_until_ready(out)

    # Reference check in plain JAX (f32); bf16 inputs -> relaxed tolerance.
    ref = jnp.maximum(x @ w.T + b, 0.0)
    assert out.shape == (N, out_dim)
    assert bool(jnp.allclose(out, ref, atol=2e-2, rtol=2e-2)), "mismatch vs reference"

    print("KERNEL_OK")
</pallas_src>

<mosaic_0001>
module attributes {stable_mosaic.version = 11 : i64} {
  func.func @layer_kernel(%arg0: i32, %arg1: i32, %arg2: memref<128x32xbf16, #tpu.memory_space<vmem>>, %arg3: memref<32x128xbf16, #tpu.memory_space<vmem>>, %arg4: memref<1x128xf32, #tpu.memory_space<vmem>>, %arg5: memref<128x128xf32, #tpu.memory_space<vmem>>) attributes {dimension_semantics = [#tpu.dimension_semantics<parallel>, #tpu.dimension_semantics<parallel>], iteration_bounds = array<i64: 1, 2>, scalar_prefetch = 0 : i64, scratch_operands = 0 : i64, tpu.core_type = #tpu.core_type<tc>, window_params = [{transform_indices = @transform_0, window_bounds = array<i64: 128, 32>}, {transform_indices = @transform_1, window_bounds = array<i64: 32, 128>}, {transform_indices = @transform_2, window_bounds = array<i64: 1, 128>}, {transform_indices = @transform_3, window_bounds = array<i64: 128, 128>}]} {
    %c0 = arith.constant 0 : index
    %c0_0 = arith.constant 0 : index
    %0 = vector.load %arg2[%c0, %c0_0] : memref<128x32xbf16, #tpu.memory_space<vmem>>, vector<128x32xbf16>
    %c0_1 = arith.constant 0 : index
    %c0_2 = arith.constant 0 : index
    %1 = vector.load %arg3[%c0_1, %c0_2] : memref<32x128xbf16, #tpu.memory_space<vmem>>, vector<32x128xbf16>
    %cst = arith.constant dense<0.000000e+00> : vector<128x128xf32>
    %2 = tpu.matmul %0, %1, %cst {dimension_numbers = #tpu.dot_dimension_numbers<[1], [0], [0], [1], [0, 0, 1, 1], [], []>} : vector<128x32xbf16>, vector<32x128xbf16>, vector<128x128xf32> -> vector<128x128xf32>
    %c0_3 = arith.constant 0 : index
    %c0_4 = arith.constant 0 : index
    %3 = vector.load %arg4[%c0_3, %c0_4] : memref<1x128xf32, #tpu.memory_space<vmem>>, vector<1x128xf32>
    %4 = vector.broadcast %3 : vector<1x128xf32> to vector<128x128xf32>
    %5 = arith.addf %2, %4 : vector<128x128xf32>
    %cst_5 = arith.constant 0.000000e+00 : f32
    %6 = vector.broadcast %cst_5 : f32 to vector<128x128xf32>
    %7 = arith.maximumf %5, %6 : vector<128x128xf32>
    %c0_6 = arith.constant 0 : index
    %c0_7 = arith.constant 0 : index
    %8 = vector.load %arg5[%c0_6, %c0_7] : memref<128x128xf32, #tpu.memory_space<vmem>>, vector<128x128xf32>
    tpu.vector_store %arg5[%c0_6, %c0_7], %7 {strides = array<i32>} : memref<128x128xf32, #tpu.memory_space<vmem>>, vector<128x128xf32>,
    return
  }
  func.func @transform_0(%arg0: i32, %arg1: i32) -> (i32, i32) {
    %c0_i32 = arith.constant 0 : i32
    %c0_i32_0 = arith.constant 0 : i32
    return %arg1, %c0_i32 : i32, i32
  }
  func.func @transform_1(%arg0: i32, %arg1: i32) -> (i32, i32) {
    %c0_i32 = arith.constant 0 : i32
    %c0_i32_0 = arith.constant 0 : i32
    return %c0_i32, %arg0 : i32, i32
  }
  func.func @transform_2(%arg0: i32, %arg1: i32) -> (i32, i32) {
    %c0_i32 = arith.constant 0 : i32
    %c0_i32_0 = arith.constant 0 : i32
    return %c0_i32, %arg0 : i32, i32
  }
  func.func @transform_3(%arg0: i32, %arg1: i32) -> (i32, i32) {
    %c0_i32 = arith.constant 0 : i32
    return %arg1, %arg0 : i32, i32
  }
}

</mosaic_0001>

<llo_original>
// kernel: tpu_custom_call.1
$region0: #{tpu_custom_call.1}
  #allocation0 [shape = 'u32[]', space=smem, size = 0x4, offset = 0x4, fixed_abs, tag = 'smem constant byte address 0x4 - core index']
  #allocation1 [shape = 'u32[144,128]{1,0:T(1,128)}', space=vmem, size = 0x12000, scoped, tag = 'internal scratch']
  %s0 = inlined_call_operand.vmem [shape: bf16[250,32], index: 0, kind: input, shape index: {}]
  %s1 = inlined_call_operand.vmem [shape: bf16[32,128], index: 1, kind: input, shape index: {}]
  %s2 = inlined_call_operand.vmem [shape: f32[1,128], index: 2, kind: input, shape index: {}]
  %s3 = inlined_call_operand.hbm [shape: f32[250,128], index: 3, kind: output, shape index: {}]
  %s4 = sld [smem:[#allocation0]]
  $region45: #{tpu_custom_call.1} parent=0
    _
  %s6 = ssub.s32 1, %s4
  %s7 = scalar_select 0, %s6, %s4
  $region1: #{tpu_custom_call.1} parent=0
    #allocation2 [shape = 'u8[131072]{0}', space=vmem, size = 0x20000, scoped, tag = 'output window, operand 0']
    #allocation3 [shape = 's32[2]{0}', space=sflag, size = 0x8, scoped, tag = 'scoped memory for tpu_custom_call.1']
    %8 = vsyncpa [#allocation3], 0
    %s9 = scalar_lea.sflag [#allocation3], 1
    %10 = vsyncpa %s9, 0
    loop: start=0, step=1, limit=4
    $region2: #{tpu_custom_call.1} parent=1 // loop_pre_header
      _
    $region3: #{tpu_custom_call.1} parent=1 // loop_header
      %s12 = sphi 0, %s16
      %p13 = scmp.ge.s32.totalorder %s12, 4
      %s19 = sphi 0, %s31
      %s20 = sphi 0, %s27
      %s21 = sphi 0, %s19
      %s22 = sphi 0, %s20
      %s23 = sphi 0, %s21
      %s24 = sphi 0, %s22
      %s34 = sphi 0, %s36
      %s37 = sphi 0, %s34
      %s38 = sphi 0, %s37
      %s54 = sphi 0, %s38
      %s60 = sphi 0, %s62
      %s63 = sphi 0, %s60
      %s64 = sphi 0, %s63
      %s80 = sphi 0, %s64
      %s86 = sphi 0, %s88
      %s89 = sphi 0, %s86
      %s90 = sphi 0, %s89
      %s106 = sphi 0, %s90
      %s114 = sphi 0, %s116
      %s117 = sphi 0, %s114
      %s118 = sphi 0, %s117
      %s134 = sphi 0, %s118
    $region4: #{tpu_custom_call.1} parent=1 // loop_header_branch
      %15 = sbr.rel (%p13) target = $region8
    $region5: #{tpu_custom_call.1} parent=1 // loop_body
      %s17 = ssub.s32 %s12, 1
      %s18 = ssub.s32 %s12, 2
      %s25 = sadd.s32 1, %s20
      %p26 = scmp.ge.s32.totalorder %s25, 2
      %s27 = scalar_select %p26, 0, %s25
      %s28 = sadd.s32 1, %s19
      %s29 = scalar_select %p26, %s28, %s19
      %p30 = scmp.ge.s32.totalorder %s29, 1
      %s31 = scalar_select %p30, 0, %s29
      %s32 = ssub.s32 %s20, %s27
      %p33 = scmp.eq.s32.totalorder %s32, 0
      %s35 = sadd.s32 %s34, 1
      %s36 = scalar_select %p33, %s34, %s35
      %p39 = pneg %p33
      %p40 = scmp.eq.s32.totalorder %s12, 1
      %p41 = por %p39, %p40
      %p42 = scmp.ne.s32.totalorder %s34, %s37
      %p43 = scmp.eq.s32.totalorder %s12, 0
      %p44 = por %p42, %p43
      %p45 = scmp.ne.s32.totalorder %s34, %s37
      %p46 = scmp.eq.s32.totalorder %s17, 1
      %p47 = por %p45, %p46
      %p48 = scmp.ne.s32.totalorder %s37, %s38
      %p49 = scmp.eq.s32.totalorder %s17, 0
      %p50 = por %p48, %p49
      %p51 = scmp.ne.s32.totalorder %s37, %s38
      %p52 = scmp.eq.s32.totalorder %s18, 1
      %p53 = por %p51, %p52
      %p55 = scmp.ne.s32.totalorder %s38, %s54
      %p56 = scmp.eq.s32.totalorder %s18, 0
      %p57 = por %p55, %p56
      %s58 = ssub.s32 %s19, %s31
      %p59 = scmp.eq.s32.totalorder %s58, 0
      %s61 = sadd.s32 %s60, 1
      %s62 = scalar_select %p59, %s60, %s61
      %p65 = pneg %p59
      %p66 = scmp.eq.s32.totalorder %s12, 1
      %p67 = por %p65, %p66
      %p68 = scmp.ne.s32.totalorder %s60, %s63
      %p69 = scmp.eq.s32.totalorder %s12, 0
      %p70 = por %p68, %p69
      %p71 = scmp.ne.s32.totalorder %s60, %s63
      %p72 = scmp.eq.s32.totalorder %s17, 1
      %p73 = por %p71, %p72
      %p74 = scmp.ne.s32.totalorder %s63, %s64
      %p75 = scmp.eq.s32.totalorder %s17, 0
      %p76 = por %p74, %p75
      %p77 = scmp.ne.s32.totalorder %s63, %s64
      %p78 = scmp.eq.s32.totalorder %s18, 1
      %p79 = por %p77, %p78
      %p81 = scmp.ne.s32.totalorder %s64, %s80
      %p82 = scmp.eq.s32.totalorder %s18, 0
      %p83 = por %p81, %p82
      %s84 = ssub.s32 %s19, %s31
      %p85 = scmp.eq.s32.totalorder %s84, 0
      %s87 = sadd.s32 %s86, 1
      %s88 = scalar_select %p85, %s86, %s87
      %p91 = pneg %p85
      %p92 = scmp.eq.s32.totalorder %s12, 1
      %p93 = por %p91, %p92
      %p94 = scmp.ne.s32.totalorder %s86, %s89
      %p95 = scmp.eq.s32.totalorder %s12, 0
      %p96 = por %p94, %p95
      %p97 = scmp.ne.s32.totalorder %s86, %s89
      %p98 = scmp.eq.s32.totalorder %s17, 1
      %p99 = por %p97, %p98
      %p100 = scmp.ne.s32.totalorder %s89, %s90
      %p101 = scmp.eq.s32.totalorder %s17, 0
      %p102 = por %p100, %p101
      %p103 = scmp.ne.s32.totalorder %s89, %s90
      %p104 = scmp.eq.s32.totalorder %s18, 1
      %p105 = por %p103, %p104
      %p107 = scmp.ne.s32.totalorder %s90, %s106
      %p108 = scmp.eq.s32.totalorder %s18, 0
      %p109 = por %p107, %p108
      %s110 = ssub.s32 %s20, %s27
      %s111 = ssub.s32 %s19, %s31
      %s112 = sor.u32 %s110, %s111
      %p113 = scmp.eq.s32.totalorder %s112, 0
      %s115 = sadd.s32 %s114, 1
      %s116 = scalar_select %p113, %s114, %s115
      %p119 = pneg %p113
      %p120 = scmp.eq.s32.totalorder %s12, 1
      %p121 = por %p119, %p120
      %p122 = scmp.ne.s32.totalorder %s114, %s117
      %p123 = scmp.eq.s32.totalorder %s12, 0
      %p124 = por %p122, %p123
      %p125 = scmp.ne.s32.totalorder %s114, %s117
      %p126 = scmp.eq.s32.totalorder %s17, 1
      %p127 = por %p125, %p126
      %p128 = scmp.ne.s32.totalorder %s117, %s118
      %p129 = scmp.eq.s32.totalorder %s17, 0
      %p130 = por %p128, %p129
      %p131 = scmp.ne.s32.totalorder %s117, %s118
      %p132 = scmp.eq.s32.totalorder %s18, 1
      %p133 = por %p131, %p132
      %p135 = scmp.ne.s32.totalorder %s118, %s134
      %p136 = scmp.eq.s32.totalorder %s18, 0
      %p137 = por %p135, %p136
      %p138 = scmp.le.s32.totalorder 1, %s12
      %p139 = scmp.lt.s32.totalorder %s12, 3
      %p140 = pnand %p138, %p139
      %p141 = pneg %p140
      // Predicated region
      $region9: #{tpu_custom_call.1} parent=5 // pred_check
        _
      $region10: #{tpu_custom_call.1} parent=5 // pred_check_branch
        %143 = sbr.rel (%p140) target = $region12
      $region11: #{tpu_custom_call.1} parent=5 // pred_region
        %s144 = ssub.s32 %s12, 1
        // Predicated region
        $region13: #{tpu_custom_call.1} parent=11 // pred_check
          %p145 = pneg %p76
        $region14: #{tpu_custom_call.1} parent=11 // pred_check_branch
          %147 = sbr.rel (%p145) target = $region16
        $region15: #{tpu_custom_call.1} parent=11 // pred_region
          %p148 = scmp.lt.s32.totalorder %s21, 0
          %s149 = scalar_select %p148, %s21, 0
          %s150 = smul.addr %s149, 4
          %s151 = scalar_lea.vmem %s1, %s150
        $region16: #{tpu_custom_call.1} parent=11 // pred_fallthru
          _
        // Predicated region
        $region17: #{tpu_custom_call.1} parent=11 // pred_check
          %p152 = pneg %p102
        $region18: #{tpu_custom_call.1} parent=11 // pred_check_branch
          %154 = sbr.rel (%p152) target = $region20
        $region19: #{tpu_custom_call.1} parent=11 // pred_region
          %p155 = scmp.lt.s32.totalorder %s21, 0
          %s156 = scalar_select %p155, %s21, 0
          %s157 = scalar_lea.vmem %s2, %s156
        $region20: #{tpu_custom_call.1} parent=11 // pred_fallthru
          _
      $region12: #{tpu_custom_call.1} parent=5 // pred_fallthru
        _
      %p158 = scmp.lt.s32.totalorder %s12, 2
      // Predicated region
      $region21: #{tpu_custom_call.1} parent=5 // pred_check
        %p159 = pneg %p158
      $region22: #{tpu_custom_call.1} parent=5 // pred_check_branch
        %161 = sbr.rel (%p159) target = $region24
      $region23: #{tpu_custom_call.1} parent=5 // pred_region
        // Predicated region
        $region25: #{tpu_custom_call.1} parent=23 // pred_check
          %p162 = pneg %p44
        $region26: #{tpu_custom_call.1} parent=23 // pred_check_branch
          %164 = sbr.rel (%p162) target = $region28
        $region27: #{tpu_custom_call.1} parent=23 // pred_region
          %s165 = smul.u32 16, %s20
          %p166 = scmp.lt.s32.totalorder %s165, 31
          %s167 = scalar_select %p166, %s165, 31
          %s168 = smul.addr %s167, 4
          %s169 = scalar_lea.vmem %s0, %s168
          %s170 = smul.u32 16, %s20
        $region28: #{tpu_custom_call.1} parent=23 // pred_fallthru
          _
      $region24: #{tpu_custom_call.1} parent=5 // pred_fallthru
        _
      %p171 = scmp.le.s32.totalorder 1, %s12
      %p172 = scmp.lt.s32.totalorder %s12, 3
      %p173 = pnand %p171, %p172
      %p174 = pneg %p173
      // Predicated region
      $region29: #{tpu_custom_call.1} parent=5 // pred_check
        _
      $region30: #{tpu_custom_call.1} parent=5 // pred_check_branch
        %176 = sbr.rel (%p173) target = $region32
      $region31: #{tpu_custom_call.1} parent=5 // pred_region
        %s177 = ssub.s32 %s12, 1
        %s178 = smul.u32 16, %s22
        %p179 = scmp.lt.s32.totalorder %s178, 31
        %s180 = scalar_select %p179, %s178, 31
        %s181 = smul.addr %s180, 4
        %s182 = scalar_lea.vmem %s0, %s181
        %p183 = pneg %p50
        %p184 = pneg %p47
        %p185 = scmp.lt.s32.totalorder %s21, 0
        %s186 = scalar_select %p185, %s21, 0
        %s187 = smul.addr %s186, 4
        %s188 = scalar_lea.vmem %s1, %s187
        %p189 = pneg %p76
        %p190 = pneg %p73
        %p191 = scmp.lt.s32.totalorder %s21, 0
        %s192 = scalar_select %p191, %s21, 0
        %s193 = scalar_lea.vmem %s2, %s192
        %p194 = pneg %p102
        %p195 = pneg %p99
        %p196 = pneg %p130
        %p197 = pneg %p127
        %s198 = sand.u32 %s117, 1
        %s199 = scalar_lea.sflag [#allocation3], %s198
        %s200 = sand.u32 %s117, 1
        %s201 = smul.addr %s200, 128
        %s202 = scalar_lea.vmem [#allocation2], %s201
        %s203 = smul.u32 16, %s22
        %p204 = scmp.lt.s32.totalorder %s203, 31
        %s205 = scalar_select %p204, %s203, 31
        %s206 = smul.addr %s205, 4
        %s207 = scalar_lea.vmem %s0, %s206
        %s208 = smul.u32 16, %s22
        %p209 = scmp.lt.s32.totalorder %s21, 0
        %s210 = scalar_select %p209, %s21, 0
        %s211 = smul.addr %s210, 4
        %s212 = scalar_lea.vmem %s1, %s211
        %p213 = scmp.lt.s32.totalorder %s21, 0
        %s214 = scalar_select %p213, %s21, 0
        %s215 = scalar_lea.vmem %s2, %s214
        %s216 = smul.u32 16, %s22
        %v218 = vld [vmem:[%s207] sm:$0xf]
        %v219 = vld [vmem:[%s207 + $0x4] sm:$0xf]
        %v220 = vld [vmem:[%s207 + $0x8] sm:$0xf]
        %v221 = vld [vmem:[%s207 + $0xc] sm:$0xf]
        %v222 = vld [vmem:[%s207 + $0x10] sm:$0xf]
        %v223 = vld [vmem:[%s207 + $0x14] sm:$0xf]
        %v224 = vld [vmem:[%s207 + $0x18] sm:$0xf]
        %v225 = vld [vmem:[%s207 + $0x1c] sm:$0xf]
        %v226 = vld [vmem:[%s207 + $0x20] sm:$0xf]
        %v227 = vld [vmem:[%s207 + $0x24] sm:$0xf]
        %v228 = vld [vmem:[%s207 + $0x28] sm:$0xf]
        %v229 = vld [vmem:[%s207 + $0x2c] sm:$0xf]
        %v230 = vld [vmem:[%s207 + $0x30] sm:$0xf]
        %v231 = vld [vmem:[%s207 + $0x34] sm:$0xf]
        %v232 = vld [vmem:[%s207 + $0x38] sm:$0xf]
        %v233 = vld [vmem:[%s207 + $0x3c] sm:$0xf]
        %v234 = vld [vmem:[%s212] sm:$0xf]
        %v235 = vld [vmem:[%s212 + $0x4] sm:$0xf]
        %v236 = vld [vmem:[%s212 + $0x8] sm:$0xf]
        %v237 = vld [vmem:[%s212 + $0xc] sm:$0xf]
        %v238 = vld [vmem:[%s215] sm:$0x1]
        %v240 = vlaneseq
        %v241 = vshrl.u32 %v240, 7
        %v242 = vsub.s32 0, %v241
        %v243 = vrot.slane %v238, %v242
        %v261 = vunpack.c.l.b16 %v218
        %v262 = vunpack.c.l.b16 %v219
        %v263 = vunpack.c.l.b16 %v220
        %v264 = vunpack.c.l.b16 %v221
        %v265 = vunpack.c.l.b16 %v222
        %v266 = vunpack.c.l.b16 %v223
        %v267 = vunpack.c.l.b16 %v224
        %v268 = vunpack.c.l.b16 %v225
        %v269 = vunpack.c.l.b16 %v226
        %v270 = vunpack.c.l.b16 %v227
        %v271 = vunpack.c.l.b16 %v228
        %v272 = vunpack.c.l.b16 %v229
        %v273 = vunpack.c.l.b16 %v230
        %v274 = vunpack.c.l.b16 %v231
        %v275 = vunpack.c.l.b16 %v232
        %v276 = vunpack.c.l.b16 %v233
        %v277 = vpack.c.b16 %v262, %v261
        %v278 = vpack.c.b16 %v264, %v263
        %v279 = vpack.c.b16 %v266, %v265
        %v280 = vpack.c.b16 %v268, %v267
        %v281 = vpack.c.b16 %v270, %v269
        %v282 = vpack.c.b16 %v272, %v271
        %v283 = vpack.c.b16 %v274, %v273
        %v284 = vpack.c.b16 %v276, %v275
        %v289 = vunpack.c.l.b16 %v234
        %v290 = vunpack.c.l.b16 %v235
        %v291 = vunpack.c.l.b16 %v236
        %v292 = vunpack.c.l.b16 %v237
        %v293 = vpack.c.b16 %v290, %v289
        %v294 = vpack.c.b16 %v292, %v291
        %vm297 = vcmask 261120
        %v299 = vsel %vm297, %v277, 0
        %v302 = vsel %vm297, %v278, 0
        %v305 = vsel %vm297, %v279, 0
        %v308 = vsel %vm297, %v280, 0
        %v311 = vsel %vm297, %v281, 0
        %v314 = vsel %vm297, %v282, 0
        %v317 = vsel %vm297, %v283, 0
        %v320 = vsel %vm297, %v284, 0
        %322 = vmatprep.subr.bf16.mxu0 0
        %323 = vmatpush1.bf16.msra.mxu0 %v293
        %324 = vmatprep.subr.bf16.mxu0 0
        %325 = vmatpush1.bf16.msra.mxu0 %v294
        %326 = vmatprep.subr.bf16.mxu0 0
        %327 = vmatpush1.bf16.msra.mxu0 0
        %328 = vmatprep.subr.bf16.mxu0 0
        %329 = vmatpush1.bf16.msra.mxu0 0
        %330 = vmatprep.subr.bf16.mxu0 0
        %331 = vmatpush1.bf16.msra.mxu0 0
        %332 = vmatprep.subr.bf16.mxu0 0
        %333 = vmatpush1.bf16.msra.mxu0 0
        %334 = vmatprep.subr.bf16.mxu0 0
        %335 = vmatpush1.bf16.msra.mxu0 0
        %336 = vmatprep.subr.bf16.mxu0 0
        %337 = vmatpush1.bf16.msra.mxu0 0
        %338 = vmatprep.subr.bf16.mxu0 0
        %339 = vmatpush1.bf16.msra.mxu0 0
        %340 = vmatprep.subr.bf16.mxu0 0
        %341 = vmatpush1.bf16.msra.mxu0 0
        %342 = vmatprep.subr.bf16.mxu0 0
        %343 = vmatpush1.bf16.msra.mxu0 0
        %344 = vmatprep.subr.bf16.mxu0 0
        %345 = vmatpush1.bf16.msra.mxu0 0
        %346 = vmatprep.subr.bf16.mxu0 0
        %347 = vmatpush1.bf16.msra.mxu0 0
        %348 = vmatprep.subr.bf16.mxu0 0
        %349 = vmatpush1.bf16.msra.mxu0 0
        %350 = vmatprep.subr.bf16.mxu0 0
        %351 = vmatpush1.bf16.msra.mxu0 0
        %352 = vmatprep.subr.bf16.mxu0 0
        %353 = vmatpush1.bf16.msra.mxu0 0
        %354 = vmatprep.mubr.bf16.mxu0 0
        %355 = vmatmul.mubr.bf16.gmra.mrb[0].mxu0 %v299
        %v356 = vpop.f32.mrb[0].mxu0
        %v357 = vadd.f32 %v243, %v356
        %v358 = vpop.f32.mrb[0].mxu0
        %v359 = vpop.f32.mrb[0].mxu0
        %v360 = vadd.f32 %v243, %v359
        %v361 = vpop.f32.mrb[0].mxu0
        %362 = vmatprep.mubr.bf16.mxu0 0
        %363 = vmatmul.mubr.bf16.gmra.mrb[0].mxu0 %v302
        %v364 = vpop.f32.mrb[0].mxu0
        %v365 = vadd.f32 %v243, %v364
        %v366 = vpop.f32.mrb[0].mxu0
        %v367 = vpop.f32.mrb[0].mxu0
        %v368 = vadd.f32 %v243, %v367
        %v369 = vpop.f32.mrb[0].mxu0
        %370 = vmatprep.mubr.bf16.mxu0 0
        %371 = vmatmul.mubr.bf16.gmra.mrb[0].mxu0 %v305
        %v372 = vpop.f32.mrb[0].mxu0
        %v373 = vadd.f32 %v243, %v372
        %v374 = vpop.f32.mrb[0].mxu0
        %v375 = vpop.f32.mrb[0].mxu0
        %v376 = vadd.f32 %v243, %v375
        %v377 = vpop.f32.mrb[0].mxu0
        %378 = vmatprep.mubr.bf16.mxu0 0
        %379 = vmatmul.mubr.bf16.gmra.mrb[0].mxu0 %v308
        %v380 = vpop.f32.mrb[0].mxu0
        %v381 = vadd.f32 %v243, %v380
        %v382 = vpop.f32.mrb[0].mxu0
        %v383 = vpop.f32.mrb[0].mxu0
        %v384 = vadd.f32 %v243, %v383
        %v385 = vpop.f32.mrb[0].mxu0
        %386 = vmatprep.mubr.bf16.mxu0 0
        %387 = vmatmul.mubr.bf16.gmra.mrb[0].mxu0 %v311
        %v388 = vpop.f32.mrb[0].mxu0
        %v389 = vadd.f32 %v243, %v388
        %v390 = vpop.f32.mrb[0].mxu0
        %v391 = vpop.f32.mrb[0].mxu0
        %v392 = vadd.f32 %v243, %v391
        %v393 = vpop.f32.mrb[0].mxu0
        %394 = vmatprep.mubr.bf16.mxu0 0
        %395 = vmatmul.mubr.bf16.gmra.mrb[0].mxu0 %v314
        %v396 = vpop.f32.mrb[0].mxu0
        %v397 = vadd.f32 %v243, %v396
        %v398 = vpop.f32.mrb[0].mxu0
        %v399 = vpop.f32.mrb[0].mxu0
        %v400 = vadd.f32 %v243, %v399
        %v401 = vpop.f32.mrb[0].mxu0
        %402 = vmatprep.mubr.bf16.mxu0 0
        %403 = vmatmul.mubr.bf16.gmra.mrb[0].mxu0 %v317
        %v404 = vpop.f32.mrb[0].mxu0
        %v405 = vadd.f32 %v243, %v404
        %v406 = vpop.f32.mrb[0].mxu0
        %v407 = vpop.f32.mrb[0].mxu0
        %v408 = vadd.f32 %v243, %v407
        %v409 = vpop.f32.mrb[0].mxu0
        %410 = vmatprep.mubr.bf16.mxu0 0
        %411 = vmatmul.mubr.bf16.gmra.mrb[0].mxu0 %v320
        %v412 = vpop.f32.mrb[0].mxu0
        %v413 = vadd.f32 %v243, %v412
        %v414 = vpop.f32.mrb[0].mxu0
        %v415 = vpop.f32.mrb[0].mxu0
        %v416 = vadd.f32 %v243, %v415
        %v417 = vpop.f32.mrb[0].mxu0
        %418 = vdwg.mxu0
        %v419 = vmax.f32 %v357, 0.0
        %v420 = vmax.f32 %v360, 0.0
        %v421 = vmax.f32 %v365, 0.0
        %v422 = vmax.f32 %v368, 0.0
        %v423 = vmax.f32 %v373, 0.0
        %v424 = vmax.f32 %v376, 0.0
        %v425 = vmax.f32 %v381, 0.0
        %v426 = vmax.f32 %v384, 0.0
        %v427 = vmax.f32 %v389, 0.0
        %v428 = vmax.f32 %v392, 0.0
        %v429 = vmax.f32 %v397, 0.0
        %v430 = vmax.f32 %v400, 0.0
        %v431 = vmax.f32 %v405, 0.0
        %v432 = vmax.f32 %v408, 0.0
        %v433 = vmax.f32 %v413, 0.0
        %v434 = vmax.f32 %v416, 0.0
        %435 = vst [vmem:[%s202] sm:$0xff] %v419
        %436 = vst [vmem:[%s202 + $0x8] sm:$0xff] %v420
        %437 = vst [vmem:[%s202 + $0x10] sm:$0xff] %v421
        %438 = vst [vmem:[%s202 + $0x18] sm:$0xff] %v422
        %439 = vst [vmem:[%s202 + $0x20] sm:$0xff] %v423
        %440 = vst [vmem:[%s202 + $0x28] sm:$0xff] %v424
        %441 = vst [vmem:[%s202 + $0x30] sm:$0xff] %v425
        %442 = vst [vmem:[%s202 + $0x38] sm:$0xff] %v426
        %443 = vst [vmem:[%s202 + $0x40] sm:$0xff] %v427
        %444 = vst [vmem:[%s202 + $0x48] sm:$0xff] %v428
        %445 = vst [vmem:[%s202 + $0x50] sm:$0xff] %v429
        %446 = vst [vmem:[%s202 + $0x58] sm:$0xff] %v430
        %447 = vst [vmem:[%s202 + $0x60] sm:$0xff] %v431
        %448 = vst [vmem:[%s202 + $0x68] sm:$0xff] %v432
        %449 = vst [vmem:[%s202 + $0x70] sm:$0xff] %v433
        %450 = vst [vmem:[%s202 + $0x78] sm:$0xff] %v434
        %s451 = sand.u32 %s117, 1
        %s452 = scalar_lea.sflag [#allocation3], %s451
        %s453 = sand.u32 %s117, 1
        %s454 = smul.addr %s453, 128
        %s455 = scalar_lea.vmem [#allocation2], %s454
        // Predicated region
        $region33: #{tpu_custom_call.1} parent=31 // pred_check
          %p456 = pneg %p127
        $region34: #{tpu_custom_call.1} parent=31 // pred_check_branch
          %458 = sbr.rel (%p456) target = $region36
        $region35: #{tpu_custom_call.1} parent=31 // pred_region
          %s459 = smul.u32 16, %s22
          %s461 = ssub.s32 2048, 2048
          %462 = vsyncadd %s452, %s461
          %s463 = sadd.s32 %s21, %s459
          %s464 = smul.addr %s463, 128
          %s465 = scalar_lea.hbm %s3, %s464
          %s466 = sshll.u32 %s455, 4
          %s467 = int_to_ptr.vmem [resolvable:$true] %s466
          %472 = dma.vmem_to_hbm [thread:$0]  %s467, 2048, %s465, %s452, 128, 128, 8
        $region36: #{tpu_custom_call.1} parent=31 // pred_fallthru
          _
      $region32: #{tpu_custom_call.1} parent=5 // pred_fallthru
        _
      %p473 = scmp.le.s32.totalorder 2, %s12
      // Predicated region
      $region37: #{tpu_custom_call.1} parent=5 // pred_check
        %p474 = pneg %p473
      $region38: #{tpu_custom_call.1} parent=5 // pred_check_branch
        %476 = sbr.rel (%p474) target = $region40
      $region39: #{tpu_custom_call.1} parent=5 // pred_region
        %s477 = ssub.s32 %s12, 2
        // Predicated region
        $region41: #{tpu_custom_call.1} parent=39 // pred_check
          %p478 = pneg %p133
        $region42: #{tpu_custom_call.1} parent=39 // pred_check_branch
          %480 = sbr.rel (%p478) target = $region44
        $region43: #{tpu_custom_call.1} parent=39 // pred_region
          %s481 = sand.u32 %s118, 1
          %s482 = scalar_lea.sflag [#allocation3], %s481
          %s483 = sand.u32 %s118, 1
          %s484 = smul.addr %s483, 128
          %s485 = scalar_lea.vmem [#allocation2], %s484
          %486 = dma.done %s482, 2048
        $region44: #{tpu_custom_call.1} parent=39 // pred_fallthru
          _
      $region40: #{tpu_custom_call.1} parent=5 // pred_fallthru
        _
    $region6: #{tpu_custom_call.1} parent=1 // loop_footer
      %s16 = sadd.s32 1, %s12
    $region7: #{tpu_custom_call.1} parent=1 // loop_footer_branch
      %11 = sbr.rel target = $region3
    $region8: #{tpu_custom_call.1} parent=1 // loop_exit
      _
    %487 = vsyncpa [#allocation3], 1
    %s488 = scalar_lea.sflag [#allocation3], 1
    %489 = vsyncpa %s488, 1

</llo_original>
